<compile_context>
chip_gen: v6e
topology: v6e:2x2x1
jax: 0.10.0
libtpu: 0.0.40
codegen_flags: <defaults>
</compile_context>

<pallas_src>
import math
import functools

import jax
import jax.numpy as jnp
from jax.experimental import pallas as pl
from jax.experimental.pallas import tpu as pltpu


def _projector_kernel(x_ref, w1_ref, b1_ref, w2_ref, b2_ref, o_ref, h_ref):
    """One (row-tile i, output-tile j) step of linear1 -> gelu -> linear2."""
    j = pl.program_id(1)

    # Compute GELU(linear_1(x)) for this row tile exactly once (at j == 0),
    # stash it in VMEM scratch (in w2's dtype), reuse for all N tiles of
    # linear_2.  Correct because j is the innermost sequential grid axis.
    @pl.when(j == 0)
    def _():
        x = x_ref[...]                                            # (tm, Dv)
        h = jnp.dot(x, w1_ref[...], preferred_element_type=jnp.float32)
        h = h + b1_ref[...].astype(jnp.float32)                   # (tm, Dt)
        # exact GELU (erf form), matching torch.nn.functional.gelu default
        h = 0.5 * h * (1.0 + jax.lax.erf(h * (1.0 / math.sqrt(2.0))))
        h_ref[...] = h.astype(h_ref.dtype)                        # cast once

    # linear_2, N tile j:  h @ W2[:, j*tn:(j+1)*tn] + b2[j*tn:(j+1)*tn]
    out = jnp.dot(h_ref[...], w2_ref[...], preferred_element_type=jnp.float32)
    out = out + b2_ref[...].astype(jnp.float32)                   # (tm, tn)
    o_ref[...] = out.astype(o_ref.dtype)


def _round_up(x, m):
    return ((x + m - 1) // m) * m


def _pick_tn(Dt, tile_n):
    """Largest multiple of 128 <= tile_n that divides Dt; full width for small Dt."""
    if Dt <= tile_n or (Dt % 128) != 0:
        return Dt
    best = 128
    t = 256
    while t <= tile_n:
        if Dt % t == 0:
            best = t
        t += 128
    return best


def _vmem_bytes(tm, tn, Dv, Dt, x_dt, w1_dt, w2_dt, b_dt, out_dt, h_dt):
    isz = lambda d: jnp.dtype(d).itemsize
    db = 2  # pipeline double-buffering
    return (db * (tm * Dv * isz(x_dt)          # x row tile
                  + Dt * tn * isz(w2_dt)       # W2 N-tile
                  + tn * isz(b_dt)             # b2 N-tile
                  + tm * tn * isz(out_dt))     # out tile
            + db * (Dv * Dt * isz(w1_dt)       # W1 (constant index map: fetched
                    + Dt * isz(b_dt))          #  once, but 2 buffers allocated)
            + tm * Dt * isz(h_dt))             # gelu(linear_1) scratch


@functools.partial(jax.jit, static_argnames=("tile_m", "tile_n", "weight_dtype"))
def llava_mm_projector(image_features, w1, b1, w2, b2, *,
                       tile_m=512, tile_n=512, weight_dtype=None):
    """image_features: [B, S, D_vision]; returns [B, S, D_text].

    w1: [D_vision, D_text], b1: [D_text]
    w2: [D_text,   D_text], b2: [D_text]
    (weights are the transpose of torch.nn.Linear.weight)

    weight_dtype: optional (e.g. jnp.bfloat16) — casts w1/w2/x before the
    kernel; both matmuls still accumulate in f32.
    """
    B, S, Dv = image_features.shape
    Dt = w1.shape[1]
    M = B * S
    out_dtype = image_features.dtype

    x2d = image_features.reshape(M, Dv)
    if weight_dtype is not None:
        w1 = w1.astype(weight_dtype)
        w2 = w2.astype(weight_dtype)
        x2d = x2d.astype(weight_dtype)

    h_dtype = w2.dtype  # store gelu(linear_1) in matmul-2's input dtype

    # --- static tile sizing --------------------------------------------------
    tn = _pick_tn(Dt, tile_n)
    tm = max(8, min(_round_up(tile_m, 8), _round_up(M, 8)))

    # Chip VMEM capacity (v5e/v6e: 128 MiB, v7x: 64 MiB per TC).
    try:
        vmem_cap = int(pltpu.get_tpu_info().vmem_capacity_bytes)
    except Exception:
        vmem_cap = 64 * 1024 * 1024  # conservative fallback (v7x-sized)

    budget = vmem_cap - 16 * 1024 * 1024  # headroom for Mosaic internals

    def need(tm_, tn_):
        return _vmem_bytes(tm_, tn_, Dv, Dt, x2d.dtype, w1.dtype, w2.dtype,
                           b1.dtype, out_dtype, h_dtype)

    # Auto-fit: shrink the W2/out N-tile first, then the row tile.
    while need(tm, tn) > budget:
        if tn > 128 and (tn % 256) == 0:
            tn //= 2
        elif tm > 8:
            tm = max(8, _round_up(tm // 2, 8))
        else:
            break

    # Equalize row tiles: balanced megacore split, minimal padding.
    grid_i = pl.cdiv(M, tm)
    tm = max(8, _round_up(pl.cdiv(M, grid_i), 8))
    grid_i = pl.cdiv(M, tm)
    M_pad = grid_i * tm

    if M_pad != M:
        x2d = jnp.pad(x2d, ((0, M_pad - M), (0, 0)))

    b1_2d = b1.reshape(1, Dt)
    b2_2d = b2.reshape(1, Dt)

    grid = (grid_i, Dt // tn)

    vmem_need = need(tm, tn)
    vmem_limit = int(max(32 * 1024 * 1024,
                         min(vmem_cap - 4 * 1024 * 1024,
                             int(vmem_need * 1.5))))

    isz = lambda d: jnp.dtype(d).itemsize
    cost = pl.CostEstimate(
        flops=2 * M_pad * Dt * (Dv + Dt),
        transcendentals=M_pad * Dt,  # erf in the GELU (once per row tile)
        bytes_accessed=(x2d.size * isz(x2d.dtype)
                        + w1.size * isz(w1.dtype)
                        + grid_i * w2.size * isz(w2.dtype)   # W2 re-streamed per row tile
                        + b1.size * isz(b1.dtype)
                        + b2.size * isz(b2.dtype)
                        + M_pad * Dt * isz(out_dtype)),
    )

    out2d = pl.pallas_call(
        _projector_kernel,
        out_shape=jax.ShapeDtypeStruct((M_pad, Dt), out_dtype),
        grid_spec=pltpu.PrefetchScalarGridSpec(
            num_scalar_prefetch=0,
            grid=grid,
            in_specs=[
                pl.BlockSpec((tm, Dv), lambda i, j: (i, 0)),   # x row tile
                pl.BlockSpec((Dv, Dt), lambda i, j: (0, 0)),   # W1 (fetched once/core)
                pl.BlockSpec((1, Dt), lambda i, j: (0, 0)),    # b1
                pl.BlockSpec((Dt, tn), lambda i, j: (0, j)),   # W2 N-tile
                pl.BlockSpec((1, tn), lambda i, j: (0, j)),    # b2 N-tile
            ],
            out_specs=pl.BlockSpec((tm, tn), lambda i, j: (i, j)),
            scratch_shapes=[pltpu.VMEM((tm, Dt), h_dtype)],    # h = gelu(l1)
        ),
        compiler_params=pltpu.CompilerParams(
            # j (N tiles of linear_2) must stay innermost & sequential because
            # the h scratch is computed at j == 0 and reused across j.
            dimension_semantics=("parallel", "arbitrary"),
            vmem_limit_bytes=vmem_limit,
        ),
        cost_estimate=cost,
    )(x2d, w1, b1_2d, w2, b2_2d)

    return out2d[:M].reshape(B, S, Dt)


def _reference(image_features, w1, b1, w2, b2):
    h = image_features.astype(jnp.float32) @ w1.astype(jnp.float32) + b1
    h = 0.5 * h * (1.0 + jax.lax.erf(h / jnp.sqrt(2.0)))
    return h @ w2.astype(jnp.float32) + b2


if __name__ == "__main__":
    # Small, module-consistent shapes:
    #   vision_config.hidden_size = 32, text_config.hidden_size = 64
    B, S, Dv, Dt = 2, 8, 32, 64

    key = jax.random.PRNGKey(0)
    k_x, k_w1, k_b1, k_w2, k_b2 = jax.random.split(key, 5)

    image_features = jax.random.normal(k_x, (B, S, Dv), dtype=jnp.float32)
    # Deterministic synthetic parameters (stored as (in, out) = Linear.weight.T)
    w1 = jax.random.normal(k_w1, (Dv, Dt), dtype=jnp.float32) * 0.05
    b1 = jax.random.normal(k_b1, (Dt,), dtype=jnp.float32) * 0.05
    w2 = jax.random.normal(k_w2, (Dt, Dt), dtype=jnp.float32) * 0.05
    b2 = jax.random.normal(k_b2, (Dt,), dtype=jnp.float32) * 0.05

    out = llava_mm_projector(image_features, w1, b1, w2, b2)
    out = jax.block_until_ready(out)

    ref = _reference(image_features, w1, b1, w2, b2)
    assert out.shape == (B, S, Dt)
    assert jnp.allclose(out, ref, atol=1e-4, rtol=1e-4), "mismatch vs reference"

    print("KERNEL_OK")
</pallas_src>

<mosaic_0001>
module attributes {stable_mosaic.version = 11 : i64} {
  func.func @_projector_kernel(%arg0: i32, %arg1: i32, %arg2: memref<16x32xf32, #tpu.memory_space<vmem>>, %arg3: memref<32x64xf32, #tpu.memory_space<vmem>>, %arg4: memref<1x64xf32, #tpu.memory_space<vmem>>, %arg5: memref<64x64xf32, #tpu.memory_space<vmem>>, %arg6: memref<1x64xf32, #tpu.memory_space<vmem>>, %arg7: memref<16x64xf32, #tpu.memory_space<vmem>>, %arg8: memref<16x64xf32, #tpu.memory_space<vmem>>) attributes {dimension_semantics = [#tpu.dimension_semantics<parallel>, #tpu.dimension_semantics<arbitrary>], iteration_bounds = array<i64: 1, 1>, scalar_prefetch = 0 : i64, scratch_operands = 1 : i64, tpu.core_type = #tpu.core_type<tc>, window_params = [{transform_indices = @transform_0, window_bounds = array<i64: 16, 32>}, {pipeline_mode = #tpu.pipeline_mode<synchronous>, transform_indices = @transform_1, window_bounds = array<i64: 32, 64>}, {pipeline_mode = #tpu.pipeline_mode<synchronous>, transform_indices = @transform_2, window_bounds = array<i64: 1, 64>}, {transform_indices = @transform_3, window_bounds = array<i64: 64, 64>}, {transform_indices = @transform_4, window_bounds = array<i64: 1, 64>}, {transform_indices = @transform_5, window_bounds = array<i64: 16, 64>}]} {
    %c0_i32 = arith.constant 0 : i32
    %0 = arith.cmpi eq, %arg1, %c0_i32 : i32
    %1 = arith.extui %0 : i1 to i32
    %c0_i32_0 = arith.constant 0 : i32
    %2 = arith.cmpi ne, %1, %c0_i32_0 : i32
    scf.if %2 {
      %c0_8 = arith.constant 0 : index
      %c0_9 = arith.constant 0 : index
      %10 = vector.load %arg2[%c0_8, %c0_9] : memref<16x32xf32, #tpu.memory_space<vmem>>, vector<16x32xf32>
      %c0_10 = arith.constant 0 : index
      %c0_11 = arith.constant 0 : index
      %11 = vector.load %arg3[%c0_10, %c0_11] : memref<32x64xf32, #tpu.memory_space<vmem>>, vector<32x64xf32>
      %cst_12 = arith.constant dense<0.000000e+00> : vector<16x64xf32>
      %12 = tpu.matmul %10, %11, %cst_12 {dimension_numbers = #tpu.dot_dimension_numbers<[1], [0], [0], [1], [0, 0, 1, 1], [], []>} : vector<16x32xf32>, vector<32x64xf32>, vector<16x64xf32> -> vector<16x64xf32>
      %c0_13 = arith.constant 0 : index
      %c0_14 = arith.constant 0 : index
      %13 = vector.load %arg4[%c0_13, %c0_14] : memref<1x64xf32, #tpu.memory_space<vmem>>, vector<1x64xf32>
      %14 = vector.broadcast %13 : vector<1x64xf32> to vector<16x64xf32>
      %15 = arith.addf %12, %14 : vector<16x64xf32>
      %cst_15 = arith.constant 5.000000e-01 : f32
      %16 = vector.broadcast %cst_15 : f32 to vector<16x64xf32>
      %17 = arith.mulf %16, %15 : vector<16x64xf32>
      %cst_16 = arith.constant 0.707106769 : f32
      %18 = vector.broadcast %cst_16 : f32 to vector<16x64xf32>
      %19 = arith.mulf %15, %18 : vector<16x64xf32>
      %20 = math.erf %19 : vector<16x64xf32>
      %cst_17 = arith.constant 1.000000e+00 : f32
      %21 = vector.broadcast %cst_17 : f32 to vector<16x64xf32>
      %22 = arith.addf %21, %20 : vector<16x64xf32>
      %23 = arith.mulf %17, %22 : vector<16x64xf32>
      %c0_18 = arith.constant 0 : index
      %c0_19 = arith.constant 0 : index
      %24 = vector.load %arg8[%c0_18, %c0_19] : memref<16x64xf32, #tpu.memory_space<vmem>>, vector<16x64xf32>
      tpu.vector_store %arg8[%c0_18, %c0_19], %23 {strides = array<i32>} : memref<16x64xf32, #tpu.memory_space<vmem>>, vector<16x64xf32>,
    } else {
    }
    %c0 = arith.constant 0 : index
    %c0_1 = arith.constant 0 : index
    %3 = vector.load %arg8[%c0, %c0_1] : memref<16x64xf32, #tpu.memory_space<vmem>>, vector<16x64xf32>
    %c0_2 = arith.constant 0 : index
    %c0_3 = arith.constant 0 : index
    %4 = vector.load %arg5[%c0_2, %c0_3] : memref<64x64xf32, #tpu.memory_space<vmem>>, vector<64x64xf32>
    %cst = arith.constant dense<0.000000e+00> : vector<16x64xf32>
    %5 = tpu.matmul %3, %4, %cst {dimension_numbers = #tpu.dot_dimension_numbers<[1], [0], [0], [1], [0, 0, 1, 1], [], []>} : vector<16x64xf32>, vector<64x64xf32>, vector<16x64xf32> -> vector<16x64xf32>
    %c0_4 = arith.constant 0 : index
    %c0_5 = arith.constant 0 : index
    %6 = vector.load %arg6[%c0_4, %c0_5] : memref<1x64xf32, #tpu.memory_space<vmem>>, vector<1x64xf32>
    %7 = vector.broadcast %6 : vector<1x64xf32> to vector<16x64xf32>
    %8 = arith.addf %5, %7 : vector<16x64xf32>
    %c0_6 = arith.constant 0 : index
    %c0_7 = arith.constant 0 : index
    %9 = vector.load %arg7[%c0_6, %c0_7] : memref<16x64xf32, #tpu.memory_space<vmem>>, vector<16x64xf32>
    tpu.vector_store %arg7[%c0_6, %c0_7], %8 {strides = array<i32>} : memref<16x64xf32, #tpu.memory_space<vmem>>, vector<16x64xf32>,
    return
  }
  func.func @transform_0(%arg0: i32, %arg1: i32) -> (i32, i32) {
    %c0_i32 = arith.constant 0 : i32
    %c0_i32_0 = arith.constant 0 : i32
    return %arg0, %c0_i32 : i32, i32
  }
  func.func @transform_1(%arg0: i32, %arg1: i32) -> (i32, i32) {
    %c0_i32 = arith.constant 0 : i32
    %c0_i32_0 = arith.constant 0 : i32
    %c0_i32_1 = arith.constant 0 : i32
    return %c0_i32, %c0_i32_0 : i32, i32
  }
  func.func @transform_2(%arg0: i32, %arg1: i32) -> (i32, i32) {
    %c0_i32 = arith.constant 0 : i32
    %c0_i32_0 = arith.constant 0 : i32
    %c0_i32_1 = arith.constant 0 : i32
    return %c0_i32, %c0_i32_0 : i32, i32
  }
  func.func @transform_3(%arg0: i32, %arg1: i32) -> (i32, i32) {
    %c0_i32 = arith.constant 0 : i32
    %c0_i32_0 = arith.constant 0 : i32
    return %c0_i32, %arg1 : i32, i32
  }
  func.func @transform_4(%arg0: i32, %arg1: i32) -> (i32, i32) {
    %c0_i32 = arith.constant 0 : i32
    %c0_i32_0 = arith.constant 0 : i32
    return %c0_i32, %arg1 : i32, i32
  }
  func.func @transform_5(%arg0: i32, %arg1: i32) -> (i32, i32) {
    %c0_i32 = arith.constant 0 : i32
    return %arg0, %arg1 : i32, i32
  }
}

</mosaic_0001>

<llo_original>
// kernel: llava_mm_projector.1
$region0: #{llava_mm_projector.1}
  #allocation0 [shape = 'u32[]', space=smem, size = 0x4, offset = 0x4, fixed_abs, tag = 'smem constant byte address 0x4 - core index']
  #allocation1 [shape = 'u32[144,128]{1,0:T(1,128)}', space=vmem, size = 0x12000, scoped, tag = 'internal scratch']
  #allocation2 [shape = 'f32[16,64]{1,0:T(8,128)}', space=vmem, size = 0x2000, scoped, tag = 'scratch operand']
  %s0 = inlined_call_operand.hbm [shape: f32[16,32], index: 0, kind: input, shape index: {}]
  %s1 = inlined_call_operand.hbm [shape: f32[32,64], index: 1, kind: input, shape index: {}]
  %s2 = inlined_call_operand.vmem [shape: f32[1,64], index: 2, kind: input, shape index: {}]
  %s3 = inlined_call_operand.hbm [shape: f32[64,64], index: 3, kind: input, shape index: {}]
  %s4 = inlined_call_operand.vmem [shape: f32[1,64], index: 4, kind: input, shape index: {}]
  %s5 = inlined_call_operand.hbm [shape: f32[16,64], index: 5, kind: output, shape index: {}]
  %s6 = sld [smem:[#allocation0]]
  $region46: #{llava_mm_projector.1} parent=0
    _
  %s8 = ssub.s32 1, %s6
  %s9 = scalar_select 0, %s8, %s6
  $region1: #{llava_mm_projector.1} parent=0
    #allocation3 [shape = 'u8[8192]{0}', space=vmem, size = 0x2000, scoped, tag = 'input window, operand 0, single buffered']
    #allocation4 [shape = 's32[1]{0}', space=sflag, size = 0x4, scoped, tag = 'scoped memory for llava_mm_projector.1']
    #allocation5 [shape = 's32[1]{0}', space=sflag, size = 0x4, scoped, tag = 'scoped memory for llava_mm_projector.1']
    #allocation6 [shape = 'u8[16384]{0}', space=vmem, size = 0x4000, scoped, tag = 'input window, operand 1, single buffered']
    #allocation7 [shape = 's32[1]{0}', space=sflag, size = 0x4, scoped, tag = 'scoped memory for llava_mm_projector.1']
    #allocation8 [shape = 'u8[32768]{0}', space=vmem, size = 0x8000, scoped, tag = 'input window, operand 3, single buffered']
    #allocation9 [shape = 'u8[8192]{0}', space=vmem, size = 0x2000, scoped, tag = 'output window, operand 0, single buffered']
    %10 = vsyncpa [#allocation4], 0
    %11 = vsyncpa [#allocation7], 0
    %12 = vsyncpa [#allocation5], 0
    // Predicated region
    $region2: #{llava_mm_projector.1} parent=1 // pred_check
      _
    $region3: #{llava_mm_projector.1} parent=1 // pred_check_branch
      %14 = sbr.rel (0) target = $region5
    $region4: #{llava_mm_projector.1} parent=1 // pred_region
      %s16 = ssub.s32 256, 256
      %17 = vsyncadd [#allocation4], %s16
      %s18 = sshll.u32 [#allocation3], 4
      %s19 = int_to_ptr.vmem [resolvable:$true] %s18
      %24 = dma.hbm_to_vmem [thread:$0]  %s0, 256, %s19, [#allocation4], 128, 128, 8
    $region5: #{llava_mm_projector.1} parent=1 // pred_fallthru
      _
    // Predicated region
    $region6: #{llava_mm_projector.1} parent=1 // pred_check
      _
    $region7: #{llava_mm_projector.1} parent=1 // pred_check_branch
      %26 = sbr.rel (0) target = $region9
    $region8: #{llava_mm_projector.1} parent=1 // pred_region
      %s28 = ssub.s32 512, 512
      %29 = vsyncadd [#allocation7], %s28
      %s30 = sshll.u32 [#allocation6], 4
      %s31 = int_to_ptr.vmem [resolvable:$true] %s30
      %36 = dma.hbm_to_vmem [thread:$0]  %s1, 512, %s31, [#allocation7], 128, 128, 8
    $region9: #{llava_mm_projector.1} parent=1 // pred_fallthru
      _
    // Predicated region
    $region10: #{llava_mm_projector.1} parent=1 // pred_check
      _
    $region11: #{llava_mm_projector.1} parent=1 // pred_check_branch
      %38 = sbr.rel (0) target = $region13
    $region12: #{llava_mm_projector.1} parent=1 // pred_region
      _
    $region13: #{llava_mm_projector.1} parent=1 // pred_fallthru
      _
    // Predicated region
    $region14: #{llava_mm_projector.1} parent=1 // pred_check
      _
    $region15: #{llava_mm_projector.1} parent=1 // pred_check_branch
      %40 = sbr.rel (0) target = $region17
    $region16: #{llava_mm_projector.1} parent=1 // pred_region
      %s42 = ssub.s32 1024, 1024
      %43 = vsyncadd [#allocation7], %s42
      %s44 = sshll.u32 [#allocation8], 4
      %s45 = int_to_ptr.vmem [resolvable:$true] %s44
      %50 = dma.hbm_to_vmem [thread:$0]  %s3, 1024, %s45, [#allocation7], 128, 128, 8
    $region17: #{llava_mm_projector.1} parent=1 // pred_fallthru
      _
    // Predicated region
    $region18: #{llava_mm_projector.1} parent=1 // pred_check
      _
    $region19: #{llava_mm_projector.1} parent=1 // pred_check_branch
      %52 = sbr.rel (0) target = $region21
    $region20: #{llava_mm_projector.1} parent=1 // pred_region
      _
    $region21: #{llava_mm_projector.1} parent=1 // pred_fallthru
      _
    // Predicated region
    $region22: #{llava_mm_projector.1} parent=1 // pred_check
      _
    $region23: #{llava_mm_projector.1} parent=1 // pred_check_branch
      %54 = sbr.rel (0) target = $region25
    $region24: #{llava_mm_projector.1} parent=1 // pred_region
      %55 = dma.done [#allocation4], 256
    $region25: #{llava_mm_projector.1} parent=1 // pred_fallthru
      _
    // Predicated region
    $region26: #{llava_mm_projector.1} parent=1 // pred_check
      _
    $region27: #{llava_mm_projector.1} parent=1 // pred_check_branch
      %57 = sbr.rel (0) target = $region29
    $region28: #{llava_mm_projector.1} parent=1 // pred_region
      %58 = dma.done [#allocation7], 512
    $region29: #{llava_mm_projector.1} parent=1 // pred_fallthru
      _
    // Predicated region
    $region30: #{llava_mm_projector.1} parent=1 // pred_check
      _
    $region31: #{llava_mm_projector.1} parent=1 // pred_check_branch
      %60 = sbr.rel (0) target = $region33
    $region32: #{llava_mm_projector.1} parent=1 // pred_region
      %61 = dma.done [#allocation7], 1024
    $region33: #{llava_mm_projector.1} parent=1 // pred_fallthru
      _
    %p62 = scmp.eq.s32.totalorder 0, 0
    // Predicated region
    $region34: #{llava_mm_projector.1} parent=1 // pred_check
      %p63 = pneg %p62
    $region35: #{llava_mm_projector.1} parent=1 // pred_check_branch
      %65 = sbr.rel (%p63) target = $region37
    $region36: #{llava_mm_projector.1} parent=1 // pred_region
      %v66 = vld [vmem:[#allocation3] sm:$0xff]
      %v67 = vld [vmem:[#allocation3 + $0x8] sm:$0xff]
      %v68 = vld [vmem:[#allocation6] sm:$0xff]
      %v69 = vld [vmem:[#allocation6 + $0x8] sm:$0xff]
      %v70 = vld [vmem:[#allocation6 + $0x10] sm:$0xff]
      %v71 = vld [vmem:[#allocation6 + $0x18] sm:$0xff]
      %v72 = vld [vmem:[%s2] sm:$0x1]
      %v74 = vlaneseq
      %v75 = vshrl.u32 %v74, 7
      %v76 = vsub.s32 0, %v75
      %v77 = vrot.slane %v72, %v76
      %vm79 = vcmask 261120
      %v81 = vsel %vm79, %v66, 0
      %v84 = vsel %vm79, %v67, 0
      %86 = vmatprep.subr.mxu0 0.0
      %87 = vmatpush1.msra.mxu0 0.0
      %88 = vmatprep.subr.mxu0 0.0
      %89 = vmatpush1.msra.mxu0 0.0
      %90 = vmatprep.subr.mxu0 0.0
      %91 = vmatpush1.msra.mxu0 0.0
      %92 = vmatprep.subr.mxu0 0.0
      %93 = vmatpush1.msra.mxu0 0.0
      %94 = vmatprep.subr.mxu0 0.0
      %95 = vmatpush1.msra.mxu0 0.0
      %96 = vmatprep.subr.mxu0 0.0
      %97 = vmatpush1.msra.mxu0 0.0
      %98 = vmatprep.subr.mxu0 0.0
      %99 = vmatpush1.msra.mxu0 0.0
      %100 = vmatprep.subr.mxu0 0.0
      %101 = vmatpush1.msra.mxu0 0.0
      %102 = vmatprep.subr.mxu0 0.0
      %103 = vmatpush1.msra.mxu0 0.0
      %104 = vmatprep.subr.mxu0 0.0
      %105 = vmatpush1.msra.mxu0 0.0
      %106 = vmatprep.subr.mxu0 0.0
      %107 = vmatpush1.msra.mxu0 0.0
      %108 = vmatprep.subr.mxu0 0.0
      %109 = vmatpush1.msra.mxu0 0.0
      %110 = vmatprep.subr.mxu0 0.0
      %111 = vmatpush1.msra.mxu0 %v71
      %112 = vmatprep.subr.mxu0 0.0
      %113 = vmatpush1.msra.mxu0 %v70
      %114 = vmatprep.subr.mxu0 0.0
      %115 = vmatpush1.msra.mxu0 %v69
      %116 = vmatprep.subr.mxu0 0.0
      %117 = vmatpush1.msra.mxu0 %v68
      %118 = vmatprep.subr.mxu0 0.0
      %119 = vmatpush2.msra.mxu0 0.0
      %120 = vmatprep.subr.mxu0 0.0
      %121 = vmatpush2.msra.mxu0 0.0
      %122 = vmatprep.subr.mxu0 0.0
      %123 = vmatpush2.msra.mxu0 0.0
      %124 = vmatprep.subr.mxu0 0.0
      %125 = vmatpush2.msra.mxu0 0.0
      %126 = vmatprep.subr.mxu0 0.0
      %127 = vmatpush2.msra.mxu0 0.0
      %128 = vmatprep.subr.mxu0 0.0
      %129 = vmatpush2.msra.mxu0 0.0
      %130 = vmatprep.subr.mxu0 0.0
      %131 = vmatpush2.msra.mxu0 0.0
      %132 = vmatprep.subr.mxu0 0.0
      %133 = vmatpush2.msra.mxu0 0.0
      %134 = vmatprep.subr.mxu0 0.0
      %135 = vmatpush2.msra.mxu0 0.0
      %136 = vmatprep.subr.mxu0 0.0
      %137 = vmatpush2.msra.mxu0 0.0
      %138 = vmatprep.subr.mxu0 0.0
      %139 = vmatpush2.msra.mxu0 0.0
      %140 = vmatprep.subr.mxu0 0.0
      %141 = vmatpush2.msra.mxu0 0.0
      %142 = vmatprep.subr.mxu0 0.0
      %143 = vmatpush2.msra.mxu0 0.0
      %144 = vmatprep.subr.mxu0 0.0
      %145 = vmatpush2.msra.mxu0 0.0
      %146 = vmatprep.subr.mxu0 0.0
      %147 = vmatpush2.msra.mxu0 0.0
      %148 = vmatprep.subr.mxu0 0.0
      %149 = vmatpush2.msra.mxu0 0.0
      %150 = vmatprep.mubr.f32.mxu0 0.0
      %151 = vmatmul.mubr.f32.gmra.mxu0 %v81
      %v152 = vpop.f32.mrf.mxu0
      %v153 = vadd.f32 %v77, %v152
      %v154 = vpop.f32.mrf.mxu0
      %155 = vmatprep.mubr.f32.mxu0 0.0
      %156 = vmatmul.mubr.f32.gmra.mxu0 %v84
      %v157 = vpop.f32.mrf.mxu0
      %v158 = vadd.f32 %v77, %v157
      %v159 = vpop.f32.mrf.mxu0
      %160 = vdwg.mxu0
      %v161 = vmul.f32 %v153, 0.5
      %v162 = vmul.f32 %v158, 0.5
      %v163 = vmul.f32 %v153, 0.70710677
      %v164 = vmul.f32 %v158, 0.70710677
      %v165 = verf.f32.pop %v163
      %v166 = verf.f32.pop %v164
      %v167 = vadd.f32 %v165, 1.0
      %v168 = vadd.f32 %v166, 1.0
      %v169 = vmul.f32 %v161, %v167
      %v170 = vmul.f32 %v162, %v168
      %vm171 = vcmask 523264
      %172 = vst.msk [vmem:[#allocation2] sm:$0xff] %vm171, %v169
      %173 = vst.msk [vmem:[#allocation2 + $0x8] sm:$0xff] %vm171, %v170
    $region37: #{llava_mm_projector.1} parent=1 // pred_fallthru
      _
    %v174 = vld [vmem:[#allocation2] sm:$0xff]
    %v175 = vld [vmem:[#allocation2 + $0x8] sm:$0xff]
    %v176 = vld [vmem:[#allocation8] sm:$0xff]
    %v177 = vld [vmem:[#allocation8 + $0x8] sm:$0xff]
    %v178 = vld [vmem:[#allocation8 + $0x10] sm:$0xff]
    %v179 = vld [vmem:[#allocation8 + $0x18] sm:$0xff]
    %v180 = vld [vmem:[#allocation8 + $0x20] sm:$0xff]
    %v181 = vld [vmem:[#allocation8 + $0x28] sm:$0xff]
    %v182 = vld [vmem:[#allocation8 + $0x30] sm:$0xff]
    %v183 = vld [vmem:[#allocation8 + $0x38] sm:$0xff]
    %v184 = vld [vmem:[%s4] sm:$0x1]
    %v186 = vlaneseq
    %v187 = vshrl.u32 %v186, 7
    %v188 = vsub.s32 0, %v187
    %v189 = vrot.slane %v184, %v188
    %vm191 = vcmask 523264
    %v193 = vsel %vm191, %v174, 0
    %v196 = vsel %vm191, %v175, 0
    %198 = vmatprep.subr.mxu0 0.0
    %199 = vmatpush1.msra.mxu0 0.0
    %200 = vmatprep.subr.mxu0 0.0
    %201 = vmatpush1.msra.mxu0 0.0
    %202 = vmatprep.subr.mxu0 0.0
    %203 = vmatpush1.msra.mxu0 0.0
    %204 = vmatprep.subr.mxu0 0.0
    %205 = vmatpush1.msra.mxu0 0.0
    %206 = vmatprep.subr.mxu0 0.0
    %207 = vmatpush1.msra.mxu0 0.0
    %208 = vmatprep.subr.mxu0 0.0
    %209 = vmatpush1.msra.mxu0 0.0
    %210 = vmatprep.subr.mxu0 0.0
    %211 = vmatpush1.msra.mxu0 0.0
    %212 = vmatprep.subr.mxu0 0.0
    %213 = vmatpush1.msra.mxu0 0.0
    %214 = vmatprep.subr.mxu0 0.0
    %215 = vmatpush1.msra.mxu0 %v183
    %216 = vmatprep.subr.mxu0 0.0
    %217 = vmatpush1.msra.mxu0 %v182
    %218 = vmatprep.subr.mxu0 0.0
    %219 = vmatpush1.msra.mxu0 %v181
    %220 = vmatprep.subr.mxu0 0.0
    %221 = vmatpush1.msra.mxu0 %v180
    %222 = vmatprep.subr.mxu0 0.0
    %223 = vmatpush1.msra.mxu0 %v179
    %224 = vmatprep.subr.mxu0 0.0
    %225 = vmatpush1.msra.mxu0 %v178
    %226 = vmatprep.subr.mxu0 0.0
    %227 = vmatpush1.msra.mxu0 %v177
    %228 = vmatprep.subr.mxu0 0.0
    %229 = vmatpush1.msra.mxu0 %v176
    %230 = vmatprep.subr.mxu0 0.0
    %231 = vmatpush2.msra.mxu0 0.0
    %232 = vmatprep.subr.mxu0 0.0
    %233 = vmatpush2.msra.mxu0 0.0
    %234 = vmatprep.subr.mxu0 0.0
    %235 = vmatpush2.msra.mxu0 0.0
    %236 = vmatprep.subr.mxu0 0.0
    %237 = vmatpush2.msra.mxu0 0.0
    %238 = vmatprep.subr.mxu0 0.0
    %239 = vmatpush2.msra.mxu0 0.0
    %240 = vmatprep.subr.mxu0 0.0
    %241 = vmatpush2.msra.mxu0 0.0
    %242 = vmatprep.subr.mxu0 0.0
    %243 = vmatpush2.msra.mxu0 0.0
    %244 = vmatprep.subr.mxu0 0.0
    %245 = vmatpush2.msra.mxu0 0.0
    %246 = vmatprep.subr.mxu0 0.0
    %247 = vmatpush2.msra.mxu0 0.0
    %248 = vmatprep.subr.mxu0 0.0
    %249 = vmatpush2.msra.mxu0 0.0
    %250 = vmatprep.subr.mxu0 0.0
    %251 = vmatpush2.msra.mxu0 0.0
    %252 = vmatprep.subr.mxu0 0.0
    %253 = vmatpush2.msra.mxu0 0.0
    %254 = vmatprep.subr.mxu0 0.0
    %255 = vmatpush2.msra.mxu0 0.0
    %256 = vmatprep.subr.mxu0 0.0
    %257 = vmatpush2.msra.mxu0 0.0
    %258 = vmatprep.subr.mxu0 0.0
    %259 = vmatpush2.msra.mxu0 0.0
    %260 = vmatprep.subr.mxu0 0.0
    %261 = vmatpush2.msra.mxu0 0.0
    %262 = vmatprep.mubr.f32.mxu0 0.0
    %263 = vmatmul.mubr.f32.gmra.mxu0 %v193
    %v264 = vpop.f32.mrf.mxu0
    %v265 = vadd.f32 %v189, %v264
    %v266 = vpop.f32.mrf.mxu0
    %267 = vmatprep.mubr.f32.mxu0 0.0
    %268 = vmatmul.mubr.f32.gmra.mxu0 %v196
    %v269 = vpop.f32.mrf.mxu0
    %v270 = vadd.f32 %v189, %v269
    %v271 = vpop.f32.mrf.mxu0
    %272 = vdwg.mxu0
    %273 = vst.msk [vmem:[#allocation9] sm:$0xff] %vm191, %v265
    %274 = vst.msk [vmem:[#allocation9 + $0x8] sm:$0xff] %vm191, %v270
    // Predicated region
    $region38: #{llava_mm_projector.1} parent=1 // pred_check
      _
    $region39: #{llava_mm_projector.1} parent=1 // pred_check_branch
      %276 = sbr.rel (0) target = $region41
    $region40: #{llava_mm_projector.1} parent=1 // pred_region
      %s278 = ssub.s32 256, 256
      %279 = vsyncadd [#allocation5], %s278
      %s280 = sshll.u32 [#allocation9], 4
      %s281 = int_to_ptr.vmem [resolvable:$true] %s280
      %286 = dma.vmem_to_hbm [thread:$0]  %s281, 256, %s5, [#allocation5], 128, 128, 8
    $region41: #{llava_mm_projector.1} parent=1 // pred_fallthru
      _
    // Predicated region
    $region42: #{llava_mm_projector.1} parent=1 // pred_check
      _
    $region43: #{llava_mm_projector.1} parent=1 // pred_check_branch
      %288 = sbr.rel (0) target = $region45
    $region44: #{llava_mm_projector.1} parent=1 // pred_region
      %289 = dma.done [#allocation5], 256
    $region45: #{llava_mm_projector.1} parent=1 // pred_fallthru
      _
    %290 = vsyncpa [#allocation4], 1
    %291 = vsyncpa [#allocation7], 1
    %292 = vsyncpa [#allocation5], 1

</llo_original>
